<compile_context>
chip_gen: v6e
topology: v6e:2x2x1
jax: 0.10.0
libtpu: 0.0.40
codegen_flags: <defaults>
</compile_context>

<pallas_src>
import numpy as np
import jax
import jax.numpy as jnp
from jax.experimental import pallas as pl
from jax.experimental.pallas import tpu as pltpu

XT_FEATURES = 93
SMILE_DIM = 500
HID = 150


def _round_up(x, m):
    return (x + m - 1) // m * m


# --------------------------------------------------------------------------- kernel
def _attention_vis_kernel(batch_ref, xt_ref, wx_ref, w2_ref,
                          alpha_ref,
                          m_ref, l_ref, stash_ref):
    f32 = jnp.float32
    NEG = jnp.float32(-1e30)

    p = pl.program_id(0)          # pass: 0 = scores + online max/sum, 1 = normalize
    t = pl.program_id(1)          # node tile

    g_pad = m_ref.shape[0]
    # node -> graph membership mask for this tile: (Gp, TILE); padded nodes (batch=-1)
    # match no graph and padded graph rows match no node.
    gids = jax.lax.broadcasted_iota(jnp.int32, (g_pad, 1), 0)
    onehot = gids == batch_ref[...]                          # (Gp, TILE) bool

    # ---- one-time init (first grid step) --------------------------------------
    @pl.when(jnp.logical_and(p == 0, t == 0))
    def _init():
        m_ref[...] = jnp.full(m_ref.shape, NEG, dtype=f32)
        l_ref[...] = jnp.zeros(l_ref.shape, dtype=f32)

    # ---- pass 0: fused scores + online per-graph max / rescaled sum -----------
    @pl.when(p == 0)
    def _pass_scores():
        # Single bf16 matmul = x@Wx + Vb[batch] + b_comb (one-hot + bias rows were
        # packed into xt/wx on the host), f32 accumulation.
        pre = jnp.dot(wx_ref[...], xt_ref[...], preferred_element_type=f32)
        # TODO(synk): on v6e/v7x tanh could run in bf16 (2x EUP rate); kept f32 so the
        #             same kernel stays exact-enough on v5e (no bf16 VPU/EUP).
        h = jnp.tanh(pre)                                    # (H_pad, TILE)
        # ei = linearW2(h): VPU multiply + sublane reduce (no width-1 MXU matmul)
        ei = jnp.sum(h * w2_ref[...], axis=0, keepdims=True)  # (1, TILE)
        stash_ref[t] = ei

        # online segment-softmax statistics
        tile_max = jnp.max(jnp.where(onehot, ei, NEG), axis=1, keepdims=True)  # (Gp,1)
        m_old = m_ref[...]
        m_new = jnp.maximum(m_old, tile_max)
        node_max = jnp.sum(jnp.where(onehot, m_new, 0.0), axis=0, keepdims=True)
        ex = jnp.exp(ei - node_max)                          # (1, TILE)
        tile_sum = jnp.sum(jnp.where(onehot, ex, 0.0), axis=1, keepdims=True)
        l_ref[...] = l_ref[...] * jnp.exp(m_old - m_new) + tile_sum
        m_ref[...] = m_new

    # ---- pass 1: normalize + lane-dense store ----------------------------------
    @pl.when(p == 1)
    def _pass_norm():
        ei = stash_ref[t]                                    # (1, TILE)
        node_max = jnp.sum(jnp.where(onehot, m_ref[...], 0.0), axis=0, keepdims=True)
        node_sum = jnp.sum(jnp.where(onehot, l_ref[...], 0.0), axis=0, keepdims=True)
        node_sum = jnp.where(node_sum > 0.0, node_sum, 1.0)  # guard padded nodes
        alpha_ref[...] = jnp.exp(ei - node_max) / node_sum


# --------------------------------------------------------------------------- host
def init_params(key, xt_features=XT_FEATURES):
    """Deterministic PyTorch-style (uniform +-1/sqrt(fan_in)) init."""
    ks = jax.random.split(key, 8)

    def linear(kw, kb, fan_in, fan_out):
        bound = 1.0 / np.sqrt(fan_in)
        w = jax.random.uniform(kw, (fan_in, fan_out), jnp.float32, -bound, bound)
        b = jax.random.uniform(kb, (fan_out,), jnp.float32, -bound, bound)
        return w, b

    w1, b1 = linear(ks[0], ks[1], 2 * HID, HID)        # linearW1: 300 -> 150
    w2, b2 = linear(ks[2], ks[3], HID, 1)              # linearW2: 150 -> 1
    wu1, bu1 = linear(ks[4], ks[5], SMILE_DIM, HID)    # linearU1: 500 -> 150
    wu2, bu2 = linear(ks[6], ks[7], xt_features, HID)  # linearU2: 93  -> 150
    return (wu1, bu1, wu2, bu2, w1, b1, w2, b2)


def _fold_params(params):
    """Fold linearU1/linearU2 into linearW1 (pure weight algebra, done once on host)."""
    wu1, bu1, wu2, bu2, w1, b1, w2, b2 = params
    w1a = w1[:HID, :]                      # applied to the U1 half of the concat
    w1b = w1[HID:, :]                      # applied to the U2 half of the concat
    ws = wu1 @ w1a                         # (500, 150) smile -> pre-tanh
    wx = wu2 @ w1b                         # (93, 150)  x_t   -> pre-tanh
    b_comb = bu1 @ w1a + bu2 @ w1b + b1    # (150,)
    # linearW2 bias b2 is constant per node -> cancels inside the segment softmax.
    return ws, wx, b_comb, w2


def attention_vis_forward(x_t, smile_latent, batch, params, *, tile_n=1024):
    """Returns (alpha, attn_score_per_graph) matching the PyTorch forward."""
    N = int(x_t.shape[0])
    G = int(smile_latent.shape[0])

    tile_n = _round_up(max(tile_n, 128), 128)
    TILE = min(tile_n, _round_up(N, 128))          # node-tile width (lane axis)
    Np = _round_up(N, TILE)
    n_tiles = Np // TILE
    Gp = _round_up(max(G, 8), 8)

    # Sublane-padded feature sizes (multiples of 16 for bf16 packing).
    # TODO(synk): for very large graph counts the packed one-hot rows grow the x_t HBM
    #             stream by G+1 rows; a bf16 gather-matmul fallback would be preferable.
    XT_pad = _round_up(XT_FEATURES + G + 1, 16)
    H_pad = _round_up(HID, 16)                     # 160

    ws, wx, b_comb, w2 = _fold_params(params)
    vb = smile_latent.astype(jnp.float32) @ ws     # (G, 150) per-graph pre-tanh term

    bf16 = jnp.bfloat16
    # TODO(synk): PyTorch runs the x_t path in float64; TPU uses bf16 matmul + f32 accum.
    xt_T = jnp.zeros((XT_pad, Np), bf16)
    xt_T = xt_T.at[:XT_FEATURES, :N].set(x_t.astype(jnp.float32).T.astype(bf16))
    onehot_rows = (batch[None, :].astype(jnp.int32)
                   == jnp.arange(G, dtype=jnp.int32)[:, None]).astype(bf16)  # (G, N)
    xt_T = xt_T.at[XT_FEATURES:XT_FEATURES + G, :N].set(onehot_rows)
    xt_T = xt_T.at[XT_FEATURES + G, :N].set(jnp.ones((N,), bf16))            # bias row

    wx_T = jnp.zeros((H_pad, XT_pad), bf16)
    wx_T = wx_T.at[:HID, :XT_FEATURES].set(wx.T.astype(bf16))
    wx_T = wx_T.at[:HID, XT_FEATURES:XT_FEATURES + G].set(vb.T.astype(bf16))
    wx_T = wx_T.at[:HID, XT_FEATURES + G].set(b_comb.astype(bf16))

    w2_col = jnp.zeros((H_pad, 1), jnp.float32).at[:HID, 0].set(w2[:, 0])
    batch_row = jnp.full((1, Np), -1, jnp.int32).at[0, :N].set(batch.astype(jnp.int32))

    # VMEM budget: double-buffered blocks + resident weights + stash + headroom for
    # the (H_pad, TILE) / (Gp, TILE) elementwise intermediates.
    vmem_bytes = (2 * XT_pad * TILE * 2 + 4 * TILE * 4
                  + 2 * H_pad * XT_pad * 2 + 2 * H_pad * 4
                  + n_tiles * TILE * 4 + 4 * Gp * 4
                  + 8 * H_pad * TILE * 4 + 4 * Gp * TILE * 4)
    vmem_limit = int(min(max(16 * 1024 * 1024, 2 * vmem_bytes), 64 * 1024 * 1024))

    last_tile = n_tiles - 1
    alpha_row = pl.pallas_call(
        _attention_vis_kernel,
        out_shape=jax.ShapeDtypeStruct((1, Np), jnp.float32),
        grid=(2, n_tiles),
        in_specs=[
            pl.BlockSpec((1, TILE), lambda p, t: (0, t)),              # batch ids (lane row)
            # x_t^T only read in pass 0; park at the last-visited tile afterwards.
            pl.BlockSpec((XT_pad, TILE),
                         lambda p, t: (0, jnp.where(p == 0, t, last_tile))),
            pl.BlockSpec((H_pad, XT_pad), lambda p, t: (0, 0)),        # [Wx^T | Vb^T | b] (resident)
            pl.BlockSpec((H_pad, 1), lambda p, t: (0, 0)),             # w2 column (resident)
        ],
        # Park the output block at 0 during pass 0 -> no redundant HBM writeback of
        # the not-yet-written alpha buffer.
        out_specs=pl.BlockSpec((1, TILE), lambda p, t: (0, jnp.where(p == 1, t, 0))),
        scratch_shapes=[
            pltpu.VMEM((Gp, 1), jnp.float32),             # per-graph running max
            pltpu.VMEM((Gp, 1), jnp.float32),             # per-graph running (rescaled) sum
            pltpu.VMEM((n_tiles, 1, TILE), jnp.float32),  # ei stash (lane-dense)
        ],
        compiler_params=pltpu.CompilerParams(
            dimension_semantics=("arbitrary", "arbitrary"),
            vmem_limit_bytes=vmem_limit),
    )(batch_row, xt_T, wx_T, w2_col)

    alpha = alpha_row[0, :N].reshape(N, 1)

    # torch.split(alpha, counts) — host-side glue (batch assumed sorted/consecutive,
    # matching torch.unique_consecutive in the reference module).
    counts = np.bincount(np.asarray(batch), minlength=G)
    offsets = [int(o) for o in np.cumsum(counts)[:-1]]
    attn_score_per_graph = tuple(jnp.split(alpha, offsets, axis=0))
    return alpha, attn_score_per_graph


def _reference(x_t, smile_latent, batch, params):
    """Pure-JAX f32 reference of the original (unfolded) PyTorch forward."""
    wu1, bu1, wu2, bu2, w1, b1, w2, b2 = params
    x_t = x_t.astype(jnp.float32)
    u1 = smile_latent @ wu1 + bu1
    u2 = x_t @ wu2 + bu2
    v = jnp.concatenate([u1[batch], u2], axis=-1)
    h = jnp.tanh(v @ w1 + b1)
    ei = (h @ w2 + b2)[:, 0]
    g = smile_latent.shape[0]
    seg_max = jax.ops.segment_max(ei, batch, num_segments=g)
    ex = jnp.exp(ei - seg_max[batch])
    seg_sum = jax.ops.segment_sum(ex, batch, num_segments=g)
    return (ex / seg_sum[batch])[:, None]


def _check_case(key, counts, params, tile_n):
    k_xt, k_sl = jax.random.split(key, 2)
    counts = list(counts)
    N, G = sum(counts), len(counts)
    batch = jnp.asarray(np.repeat(np.arange(G), counts), dtype=jnp.int32)
    x_t = jax.random.normal(k_xt, (N, XT_FEATURES), jnp.float32)
    smile_latent = jax.random.normal(k_sl, (G, SMILE_DIM), jnp.float32)

    alpha, per_graph = attention_vis_forward(x_t, smile_latent, batch, params,
                                             tile_n=tile_n)
    alpha = jax.block_until_ready(alpha)

    alpha_ref = _reference(x_t, smile_latent, batch, params)
    np.testing.assert_allclose(np.asarray(alpha), np.asarray(alpha_ref),
                               rtol=2e-2, atol=2e-3)
    assert alpha.shape == (N, 1)
    assert len(per_graph) == G
    assert [int(a.shape[0]) for a in per_graph] == counts
    sums = np.asarray(jnp.concatenate([a.sum(keepdims=True)[:, :1] for a in per_graph]))
    np.testing.assert_allclose(sums, np.ones((G, 1), np.float32), rtol=1e-4, atol=1e-4)


if __name__ == "__main__":
    key = jax.random.PRNGKey(0)
    k_par, k_a, k_b = jax.random.split(key, 3)
    params = init_params(k_par)

    # Small case matching the module spec: 2 graphs with 3 and 5 nodes.
    _check_case(k_a, [3, 5], params, tile_n=1024)

    # Multi-tile path (3 node tiles of 128): exercises the online segment-softmax
    # rescaling when graphs straddle tile boundaries.
    _check_case(k_b, [40, 80, 25, 100, 55], params, tile_n=128)

    print("KERNEL_OK")
</pallas_src>

<mosaic_0001>
module attributes {stable_mosaic.version = 11 : i64} {
  func.func @_attention_vis_kernel(%arg0: i32, %arg1: i32, %arg2: memref<1x128xi32, #tpu.memory_space<vmem>>, %arg3: memref<96x128xbf16, #tpu.memory_space<vmem>>, %arg4: memref<160x96xbf16, #tpu.memory_space<vmem>>, %arg5: memref<160x1xf32, #tpu.memory_space<vmem>>, %arg6: memref<1x128xf32, #tpu.memory_space<vmem>>, %arg7: memref<8x1xf32, #tpu.memory_space<vmem>>, %arg8: memref<8x1xf32, #tpu.memory_space<vmem>>, %arg9: memref<1x1x128xf32, #tpu.memory_space<vmem>>) attributes {dimension_semantics = [#tpu.dimension_semantics<arbitrary>, #tpu.dimension_semantics<arbitrary>], iteration_bounds = array<i64: 2, 1>, scalar_prefetch = 0 : i64, scratch_operands = 3 : i64, tpu.core_type = #tpu.core_type<tc>, window_params = [{transform_indices = @transform_0, window_bounds = array<i64: 1, 128>}, {transform_indices = @transform_1, window_bounds = array<i64: 96, 128>}, {pipeline_mode = #tpu.pipeline_mode<synchronous>, transform_indices = @transform_2, window_bounds = array<i64: 160, 96>}, {pipeline_mode = #tpu.pipeline_mode<synchronous>, transform_indices = @transform_3, window_bounds = array<i64: 160, 1>}, {transform_indices = @transform_4, window_bounds = array<i64: 1, 128>}]} {
    %0 = tpu.iota {dimensions = array<i32: 0>} : vector<8x1xi32>
    %c0 = arith.constant 0 : index
    %c0_0 = arith.constant 0 : index
    %1 = vector.load %arg2[%c0, %c0_0] : memref<1x128xi32, #tpu.memory_space<vmem>>, vector<1x128xi32>
    %2 = vector.broadcast %0 : vector<8x1xi32> to vector<8x128xi32>
    %3 = vector.broadcast %1 : vector<1x128xi32> to vector<8x128xi32>
    %4 = arith.cmpi eq, %2, %3 : vector<8x128xi32>
    %c0_i32 = arith.constant 0 : i32
    %5 = arith.cmpi eq, %arg0, %c0_i32 : i32
    %c0_i32_1 = arith.constant 0 : i32
    %6 = arith.cmpi eq, %arg1, %c0_i32_1 : i32
    %7 = arith.andi %5, %6 : i1
    %8 = arith.extui %7 : i1 to i32
    %cst = arith.constant -1.000000e+30 : f32
    %c0_i32_2 = arith.constant 0 : i32
    %9 = arith.cmpi ne, %8, %c0_i32_2 : i32
    scf.if %9 {
      %16 = vector.broadcast %cst : f32 to vector<8x1xf32>
      %c0_7 = arith.constant 0 : index
      %c0_8 = arith.constant 0 : index
      %17 = vector.load %arg7[%c0_7, %c0_8] : memref<8x1xf32, #tpu.memory_space<vmem>>, vector<8x1xf32>
      tpu.vector_store %arg7[%c0_7, %c0_8], %16 {strides = array<i32>} : memref<8x1xf32, #tpu.memory_space<vmem>>, vector<8x1xf32>,
      %cst_9 = arith.constant 0.000000e+00 : f32
      %18 = vector.broadcast %cst_9 : f32 to vector<8x1xf32>
      %c0_10 = arith.constant 0 : index
      %c0_11 = arith.constant 0 : index
      %19 = vector.load %arg8[%c0_10, %c0_11] : memref<8x1xf32, #tpu.memory_space<vmem>>, vector<8x1xf32>
      tpu.vector_store %arg8[%c0_10, %c0_11], %18 {strides = array<i32>} : memref<8x1xf32, #tpu.memory_space<vmem>>, vector<8x1xf32>,
    } else {
    }
    %c0_i32_3 = arith.constant 0 : i32
    %10 = arith.cmpi eq, %arg0, %c0_i32_3 : i32
    %11 = arith.extui %10 : i1 to i32
    %cst_4 = arith.constant -1.000000e+30 : f32
    %c0_i32_5 = arith.constant 0 : i32
    %12 = arith.cmpi ne, %11, %c0_i32_5 : i32
    scf.if %12 {
      %c0_7 = arith.constant 0 : index
      %c0_8 = arith.constant 0 : index
      %16 = vector.load %arg4[%c0_7, %c0_8] : memref<160x96xbf16, #tpu.memory_space<vmem>>, vector<160x96xbf16>
      %c0_9 = arith.constant 0 : index
      %c0_10 = arith.constant 0 : index
      %17 = vector.load %arg3[%c0_9, %c0_10] : memref<96x128xbf16, #tpu.memory_space<vmem>>, vector<96x128xbf16>
      %cst_11 = arith.constant dense<0.000000e+00> : vector<160x128xf32>
      %18 = tpu.matmul %16, %17, %cst_11 {dimension_numbers = #tpu.dot_dimension_numbers<[1], [0], [0], [1], [0, 0, 1, 1], [], []>} : vector<160x96xbf16>, vector<96x128xbf16>, vector<160x128xf32> -> vector<160x128xf32>
      %19 = math.tanh %18 : vector<160x128xf32>
      %c0_12 = arith.constant 0 : index
      %c0_13 = arith.constant 0 : index
      %20 = vector.load %arg5[%c0_12, %c0_13] : memref<160x1xf32, #tpu.memory_space<vmem>>, vector<160x1xf32>
      %21 = vector.broadcast %20 : vector<160x1xf32> to vector<160x128xf32>
      %22 = arith.mulf %19, %21 : vector<160x128xf32>
      %cst_14 = arith.constant dense<0.000000e+00> : vector<128xf32>
      %23 = vector.multi_reduction <add>, %22, %cst_14 [0] : vector<160x128xf32> to vector<128xf32>
      %24 = vector.shape_cast %23 : vector<128xf32> to vector<1x128xf32>
      %25 = arith.index_cast %arg1 : i32 to index
      %c0_15 = arith.constant 0 : index
      %c0_16 = arith.constant 0 : index
      %26 = vector.load %arg9[%25, %c0_15, %c0_16] : memref<1x1x128xf32, #tpu.memory_space<vmem>>, vector<1x1x128xf32>
      %27 = vector.shape_cast %26 : vector<1x1x128xf32> to vector<1x128xf32>
      %28 = vector.shape_cast %24 : vector<1x128xf32> to vector<1x1x128xf32>
      tpu.vector_store %arg9[%25, %c0_15, %c0_16], %28 {strides = array<i32>} : memref<1x1x128xf32, #tpu.memory_space<vmem>>, vector<1x1x128xf32>,
      %29 = vector.shape_cast %24 : vector<1x128xf32> to vector<1x128xf32>
      %30 = vector.broadcast %29 : vector<1x128xf32> to vector<8x128xf32>
      %31 = vector.broadcast %cst_4 : f32 to vector<8x128xf32>
      %32 = arith.select %4, %30, %31 : vector<8x128xi1>, vector<8x128xf32>
      %cst_17 = arith.constant dense<0xFF800000> : vector<8xf32>
      %33 = vector.multi_reduction <maximumf>, %32, %cst_17 [1] : vector<8x128xf32> to vector<8xf32>
      %34 = vector.shape_cast %33 : vector<8xf32> to vector<8x1xf32>
      %c0_18 = arith.constant 0 : index
      %c0_19 = arith.constant 0 : index
      %35 = vector.load %arg7[%c0_18, %c0_19] : memref<8x1xf32, #tpu.memory_space<vmem>>, vector<8x1xf32>
      %36 = arith.maximumf %35, %34 : vector<8x1xf32>
      %cst_20 = arith.constant 0.000000e+00 : f32
      %37 = vector.shape_cast %36 : vector<8x1xf32> to vector<8x1xf32>
      %38 = vector.broadcast %37 : vector<8x1xf32> to vector<8x128xf32>
      %39 = vector.broadcast %cst_20 : f32 to vector<8x128xf32>
      %40 = arith.select %4, %38, %39 : vector<8x128xi1>, vector<8x128xf32>
      %cst_21 = arith.constant dense<0.000000e+00> : vector<128xf32>
      %41 = vector.multi_reduction <add>, %40, %cst_21 [0] : vector<8x128xf32> to vector<128xf32>
      %42 = vector.shape_cast %41 : vector<128xf32> to vector<1x128xf32>
      %43 = arith.subf %24, %42 : vector<1x128xf32>
      %44 = math.exp %43 : vector<1x128xf32>
      %cst_22 = arith.constant 0.000000e+00 : f32
      %45 = vector.shape_cast %44 : vector<1x128xf32> to vector<1x128xf32>
      %46 = vector.broadcast %45 : vector<1x128xf32> to vector<8x128xf32>
      %47 = vector.broadcast %cst_22 : f32 to vector<8x128xf32>
      %48 = arith.select %4, %46, %47 : vector<8x128xi1>, vector<8x128xf32>
      %cst_23 = arith.constant dense<0.000000e+00> : vector<8xf32>
      %49 = vector.multi_reduction <add>, %48, %cst_23 [1] : vector<8x128xf32> to vector<8xf32>
      %50 = vector.shape_cast %49 : vector<8xf32> to vector<8x1xf32>
      %c0_24 = arith.constant 0 : index
      %c0_25 = arith.constant 0 : index
      %51 = vector.load %arg8[%c0_24, %c0_25] : memref<8x1xf32, #tpu.memory_space<vmem>>, vector<8x1xf32>
      %52 = arith.subf %35, %36 : vector<8x1xf32>
      %53 = math.exp %52 : vector<8x1xf32>
      %54 = arith.mulf %51, %53 : vector<8x1xf32>
      %55 = arith.addf %54, %50 : vector<8x1xf32>
      %c0_26 = arith.constant 0 : index
      %c0_27 = arith.constant 0 : index
      %56 = vector.load %arg8[%c0_26, %c0_27] : memref<8x1xf32, #tpu.memory_space<vmem>>, vector<8x1xf32>
      tpu.vector_store %arg8[%c0_26, %c0_27], %55 {strides = array<i32>} : memref<8x1xf32, #tpu.memory_space<vmem>>, vector<8x1xf32>,
      %c0_28 = arith.constant 0 : index
      %c0_29 = arith.constant 0 : index
      %57 = vector.load %arg7[%c0_28, %c0_29] : memref<8x1xf32, #tpu.memory_space<vmem>>, vector<8x1xf32>
      tpu.vector_store %arg7[%c0_28, %c0_29], %36 {strides = array<i32>} : memref<8x1xf32, #tpu.memory_space<vmem>>, vector<8x1xf32>,
    } else {
    }
    %c1_i32 = arith.constant 1 : i32
    %13 = arith.cmpi eq, %arg0, %c1_i32 : i32
    %14 = arith.extui %13 : i1 to i32
    %c0_i32_6 = arith.constant 0 : i32
    %15 = arith.cmpi ne, %14, %c0_i32_6 : i32
    scf.if %15 {
      %16 = arith.index_cast %arg1 : i32 to index
      %c0_7 = arith.constant 0 : index
      %c0_8 = arith.constant 0 : index
      %17 = vector.load %arg9[%16, %c0_7, %c0_8] : memref<1x1x128xf32, #tpu.memory_space<vmem>>, vector<1x1x128xf32>
      %18 = vector.shape_cast %17 : vector<1x1x128xf32> to vector<1x128xf32>
      %c0_9 = arith.constant 0 : index
      %c0_10 = arith.constant 0 : index
      %19 = vector.load %arg7[%c0_9, %c0_10] : memref<8x1xf32, #tpu.memory_space<vmem>>, vector<8x1xf32>
      %cst_11 = arith.constant 0.000000e+00 : f32
      %20 = vector.shape_cast %19 : vector<8x1xf32> to vector<8x1xf32>
      %21 = vector.broadcast %20 : vector<8x1xf32> to vector<8x128xf32>
      %22 = vector.broadcast %cst_11 : f32 to vector<8x128xf32>
      %23 = arith.select %4, %21, %22 : vector<8x128xi1>, vector<8x128xf32>
      %cst_12 = arith.constant dense<0.000000e+00> : vector<128xf32>
      %24 = vector.multi_reduction <add>, %23, %cst_12 [0] : vector<8x128xf32> to vector<128xf32>
      %25 = vector.shape_cast %24 : vector<128xf32> to vector<1x128xf32>
      %c0_13 = arith.constant 0 : index
      %c0_14 = arith.constant 0 : index
      %26 = vector.load %arg8[%c0_13, %c0_14] : memref<8x1xf32, #tpu.memory_space<vmem>>, vector<8x1xf32>
      %cst_15 = arith.constant 0.000000e+00 : f32
      %27 = vector.shape_cast %26 : vector<8x1xf32> to vector<8x1xf32>
      %28 = vector.broadcast %27 : vector<8x1xf32> to vector<8x128xf32>
      %29 = vector.broadcast %cst_15 : f32 to vector<8x128xf32>
      %30 = arith.select %4, %28, %29 : vector<8x128xi1>, vector<8x128xf32>
      %cst_16 = arith.constant dense<0.000000e+00> : vector<128xf32>
      %31 = vector.multi_reduction <add>, %30, %cst_16 [0] : vector<8x128xf32> to vector<128xf32>
      %32 = vector.shape_cast %31 : vector<128xf32> to vector<1x128xf32>
      %cst_17 = arith.constant 0.000000e+00 : f32
      %33 = vector.broadcast %cst_17 : f32 to vector<1x128xf32>
      %34 = arith.cmpf ogt, %32, %33 : vector<1x128xf32>
      %cst_18 = arith.constant 1.000000e+00 : f32
      %35 = vector.broadcast %cst_18 : f32 to vector<1x128xf32>
      %36 = arith.select %34, %32, %35 : vector<1x128xi1>, vector<1x128xf32>
      %37 = arith.subf %18, %25 : vector<1x128xf32>
      %38 = math.exp %37 : vector<1x128xf32>
      %39 = arith.divf %38, %36 : vector<1x128xf32>
      %c0_19 = arith.constant 0 : index
      %c0_20 = arith.constant 0 : index
      %40 = vector.load %arg6[%c0_19, %c0_20] : memref<1x128xf32, #tpu.memory_space<vmem>>, vector<1x128xf32>
      tpu.vector_store %arg6[%c0_19, %c0_20], %39 {strides = array<i32>} : memref<1x128xf32, #tpu.memory_space<vmem>>, vector<1x128xf32>,
    } else {
    }
    return
  }
  func.func @transform_0(%arg0: i32, %arg1: i32) -> (i32, i32) {
    %c0_i32 = arith.constant 0 : i32
    %c0_i32_0 = arith.constant 0 : i32
    return %c0_i32, %arg1 : i32, i32
  }
  func.func @transform_1(%arg0: i32, %arg1: i32) -> (i32, i32) {
    %c0_i32 = arith.constant 0 : i32
    %0 = arith.cmpi eq, %arg0, %c0_i32 : i32
    %c0_i32_0 = arith.constant 0 : i32
    %1 = arith.select %0, %arg1, %c0_i32_0 : i32
    %c0_i32_1 = arith.constant 0 : i32
    %c0_i32_2 = arith.constant 0 : i32
    return %c0_i32_1, %1 : i32, i32
  }
  func.func @transform_2(%arg0: i32, %arg1: i32) -> (i32, i32) {
    %c0_i32 = arith.constant 0 : i32
    %c0_i32_0 = arith.constant 0 : i32
    %c0_i32_1 = arith.constant 0 : i32
    return %c0_i32, %c0_i32_0 : i32, i32
  }
  func.func @transform_3(%arg0: i32, %arg1: i32) -> (i32, i32) {
    %c0_i32 = arith.constant 0 : i32
    %c0_i32_0 = arith.constant 0 : i32
    %c0_i32_1 = arith.constant 0 : i32
    return %c0_i32, %c0_i32_0 : i32, i32
  }
  func.func @transform_4(%arg0: i32, %arg1: i32) -> (i32, i32) {
    %c1_i32 = arith.constant 1 : i32
    %0 = arith.cmpi eq, %arg0, %c1_i32 : i32
    %c0_i32 = arith.constant 0 : i32
    %1 = arith.select %0, %arg1, %c0_i32 : i32
    %c0_i32_0 = arith.constant 0 : i32
    %c0_i32_1 = arith.constant 0 : i32
    return %c0_i32_0, %1 : i32, i32
  }
}

</mosaic_0001>

<llo_original>
// kernel: tpu_custom_call.1
$region0: #{tpu_custom_call.1}
  #allocation0 [shape = 'u32[]', space=smem, size = 0x4, offset = 0x4, fixed_abs, tag = 'smem constant byte address 0x4 - core index']
  #allocation1 [shape = 'u32[144,128]{1,0:T(1,128)}', space=vmem, size = 0x12000, scoped, tag = 'internal scratch']
  #allocation2 [shape = 'f32[8,1]{1,0:T(8,128)}', space=vmem, size = 0x1000, scoped, tag = 'scratch operand']
  #allocation3 [shape = 'f32[8,1]{1,0:T(8,128)}', space=vmem, size = 0x1000, scoped, tag = 'scratch operand']
  #allocation4 [shape = 'f32[1,1,128]{2,1,0:T(1,128)}', space=vmem, size = 0x200, scoped, tag = 'scratch operand']
  %s0 = inlined_call_operand.vmem [shape: s32[1,128], index: 0, kind: input, shape index: {}]
  %s1 = inlined_call_operand.vmem [shape: bf16[96,128], index: 1, kind: input, shape index: {}]
  %s2 = inlined_call_operand.vmem [shape: bf16[160,96], index: 2, kind: input, shape index: {}]
  %s3 = inlined_call_operand.vmem [shape: f32[160,1], index: 3, kind: input, shape index: {}]
  %s4 = inlined_call_operand.hbm [shape: f32[1,128], index: 4, kind: output, shape index: {}]
  %s5 = sld [smem:[#allocation0]]
  $region61: #{tpu_custom_call.1} parent=0
    _
  %s7 = ssub.s32 1, %s5
  %s8 = scalar_select 0, %s7, %s5
  $region1: #{tpu_custom_call.1} parent=0
    #allocation5 [shape = 'u8[1024]{0}', space=vmem, size = 0x400, scoped, tag = 'output window, operand 0']
    #allocation6 [shape = 's32[2]{0}', space=sflag, size = 0x8, scoped, tag = 'scoped memory for tpu_custom_call.1']
    %9 = vsyncpa [#allocation6], 0
    %s10 = scalar_lea.sflag [#allocation6], 1
    %11 = vsyncpa %s10, 0
    loop: start=0, step=1, limit=4
    $region2: #{tpu_custom_call.1} parent=1 // loop_pre_header
      _
    $region3: #{tpu_custom_call.1} parent=1 // loop_header
      %s13 = sphi 0, %s17
      %p14 = scmp.ge.s32.totalorder %s13, 4
      %s20 = sphi 0, %s32
      %s21 = sphi 0, %s28
      %s22 = sphi 0, %s20
      %s23 = sphi 0, %s21
      %s24 = sphi 0, %s22
      %s25 = sphi 0, %s23
      %s35 = sphi 0, %s37
      %s38 = sphi 0, %s35
      %s39 = sphi 0, %s38
      %s55 = sphi 0, %s39
      %s65 = sphi 0, %s67
      %s68 = sphi 0, %s65
      %s69 = sphi 0, %s68
      %s85 = sphi 0, %s69
      %s89 = sphi 0, %s89
      %s91 = sphi 0, %s89
      %s92 = sphi 0, %s91
      %s106 = sphi 0, %s92
      %s110 = sphi 0, %s110
      %s112 = sphi 0, %s110
      %s113 = sphi 0, %s112
      %s127 = sphi 0, %s113
      %s137 = sphi 0, %s139
      %s140 = sphi 0, %s137
      %s141 = sphi 0, %s140
      %s157 = sphi 0, %s141
    $region4: #{tpu_custom_call.1} parent=1 // loop_header_branch
      %16 = sbr.rel (%p14) target = $region8
    $region5: #{tpu_custom_call.1} parent=1 // loop_body
      %s18 = ssub.s32 %s13, 1
      %s19 = ssub.s32 %s13, 2
      %s26 = sadd.s32 1, %s21
      %p27 = scmp.ge.s32.totalorder %s26, 1
      %s28 = scalar_select %p27, 0, %s26
      %s29 = sadd.s32 1, %s20
      %s30 = scalar_select %p27, %s29, %s20
      %p31 = scmp.ge.s32.totalorder %s30, 2
      %s32 = scalar_select %p31, 0, %s30
      %s33 = ssub.s32 %s21, %s28
      %p34 = scmp.eq.s32.totalorder %s33, 0
      %s36 = sadd.s32 %s35, 1
      %s37 = scalar_select %p34, %s35, %s36
      %p40 = pneg %p34
      %p41 = scmp.eq.s32.totalorder %s13, 1
      %p42 = por %p40, %p41
      %p43 = scmp.ne.s32.totalorder %s35, %s38
      %p44 = scmp.eq.s32.totalorder %s13, 0
      %p45 = por %p43, %p44
      %p46 = scmp.ne.s32.totalorder %s35, %s38
      %p47 = scmp.eq.s32.totalorder %s18, 1
      %p48 = por %p46, %p47
      %p49 = scmp.ne.s32.totalorder %s38, %s39
      %p50 = scmp.eq.s32.totalorder %s18, 0
      %p51 = por %p49, %p50
      %p52 = scmp.ne.s32.totalorder %s38, %s39
      %p53 = scmp.eq.s32.totalorder %s19, 1
      %p54 = por %p52, %p53
      %p56 = scmp.ne.s32.totalorder %s39, %s55
      %p57 = scmp.eq.s32.totalorder %s19, 0
      %p58 = por %p56, %p57
      %p59 = scmp.eq.s32.totalorder %s20, 0
      %s60 = scalar_select %p59, %s21, 0
      %p61 = scmp.eq.s32.totalorder %s32, 0
      %s62 = scalar_select %p61, %s28, 0
      %s63 = ssub.s32 %s60, %s62
      %p64 = scmp.eq.s32.totalorder %s63, 0
      %s66 = sadd.s32 %s65, 1
      %s67 = scalar_select %p64, %s65, %s66
      %p70 = pneg %p64
      %p71 = scmp.eq.s32.totalorder %s13, 1
      %p72 = por %p70, %p71
      %p73 = scmp.ne.s32.totalorder %s65, %s68
      %p74 = scmp.eq.s32.totalorder %s13, 0
      %p75 = por %p73, %p74
      %p76 = scmp.ne.s32.totalorder %s65, %s68
      %p77 = scmp.eq.s32.totalorder %s18, 1
      %p78 = por %p76, %p77
      %p79 = scmp.ne.s32.totalorder %s68, %s69
      %p80 = scmp.eq.s32.totalorder %s18, 0
      %p81 = por %p79, %p80
      %p82 = scmp.ne.s32.totalorder %s68, %s69
      %p83 = scmp.eq.s32.totalorder %s19, 1
      %p84 = por %p82, %p83
      %p86 = scmp.ne.s32.totalorder %s69, %s85
      %p87 = scmp.eq.s32.totalorder %s19, 0
      %p88 = por %p86, %p87
      %s90 = sadd.s32 %s89, 1
      %p93 = scmp.eq.s32.totalorder %s13, 1
      %p94 = scmp.ne.s32.totalorder %s89, %s91
      %p95 = scmp.eq.s32.totalorder %s13, 0
      %p96 = por %p94, %p95
      %p97 = scmp.ne.s32.totalorder %s89, %s91
      %p98 = scmp.eq.s32.totalorder %s18, 1
      %p99 = por %p97, %p98
      %p100 = scmp.ne.s32.totalorder %s91, %s92
      %p101 = scmp.eq.s32.totalorder %s18, 0
      %p102 = por %p100, %p101
      %p103 = scmp.ne.s32.totalorder %s91, %s92
      %p104 = scmp.eq.s32.totalorder %s19, 1
      %p105 = por %p103, %p104
      %p107 = scmp.ne.s32.totalorder %s92, %s106
      %p108 = scmp.eq.s32.totalorder %s19, 0
      %p109 = por %p107, %p108
      %s111 = sadd.s32 %s110, 1
      %p114 = scmp.eq.s32.totalorder %s13, 1
      %p115 = scmp.ne.s32.totalorder %s110, %s112
      %p116 = scmp.eq.s32.totalorder %s13, 0
      %p117 = por %p115, %p116
      %p118 = scmp.ne.s32.totalorder %s110, %s112
      %p119 = scmp.eq.s32.totalorder %s18, 1
      %p120 = por %p118, %p119
      %p121 = scmp.ne.s32.totalorder %s112, %s113
      %p122 = scmp.eq.s32.totalorder %s18, 0
      %p123 = por %p121, %p122
      %p124 = scmp.ne.s32.totalorder %s112, %s113
      %p125 = scmp.eq.s32.totalorder %s19, 1
      %p126 = por %p124, %p125
      %p128 = scmp.ne.s32.totalorder %s113, %s127
      %p129 = scmp.eq.s32.totalorder %s19, 0
      %p130 = por %p128, %p129
      %p131 = scmp.eq.s32.totalorder %s20, 1
      %s132 = scalar_select %p131, %s21, 0
      %p133 = scmp.eq.s32.totalorder %s32, 1
      %s134 = scalar_select %p133, %s28, 0
      %s135 = ssub.s32 %s132, %s134
      %p136 = scmp.eq.s32.totalorder %s135, 0
      %s138 = sadd.s32 %s137, 1
      %s139 = scalar_select %p136, %s137, %s138
      %p142 = pneg %p136
      %p143 = scmp.eq.s32.totalorder %s13, 1
      %p144 = por %p142, %p143
      %p145 = scmp.ne.s32.totalorder %s137, %s140
      %p146 = scmp.eq.s32.totalorder %s13, 0
      %p147 = por %p145, %p146
      %p148 = scmp.ne.s32.totalorder %s137, %s140
      %p149 = scmp.eq.s32.totalorder %s18, 1
      %p150 = por %p148, %p149
      %p151 = scmp.ne.s32.totalorder %s140, %s141
      %p152 = scmp.eq.s32.totalorder %s18, 0
      %p153 = por %p151, %p152
      %p154 = scmp.ne.s32.totalorder %s140, %s141
      %p155 = scmp.eq.s32.totalorder %s19, 1
      %p156 = por %p154, %p155
      %p158 = scmp.ne.s32.totalorder %s141, %s157
      %p159 = scmp.eq.s32.totalorder %s19, 0
      %p160 = por %p158, %p159
      %p161 = scmp.le.s32.totalorder 1, %s13
      %p162 = scmp.lt.s32.totalorder %s13, 3
      %p163 = pnand %p161, %p162
      %p164 = pneg %p163
      // Predicated region
      $region9: #{tpu_custom_call.1} parent=5 // pred_check
        _
      $region10: #{tpu_custom_call.1} parent=5 // pred_check_branch
        %166 = sbr.rel (%p163) target = $region12
      $region11: #{tpu_custom_call.1} parent=5 // pred_region
        %s167 = ssub.s32 %s13, 1
        // Predicated region
        $region13: #{tpu_custom_call.1} parent=11 // pred_check
          %p168 = pneg %p51
        $region14: #{tpu_custom_call.1} parent=11 // pred_check_branch
          %170 = sbr.rel (%p168) target = $region16
        $region15: #{tpu_custom_call.1} parent=11 // pred_region
          %p171 = scmp.lt.s32.totalorder %s23, 0
          %s172 = scalar_select %p171, %s23, 0
          %s173 = scalar_lea.vmem %s0, %s172
        $region16: #{tpu_custom_call.1} parent=11 // pred_fallthru
          _
        // Predicated region
        $region17: #{tpu_custom_call.1} parent=11 // pred_check
          %p174 = pneg %p102
        $region18: #{tpu_custom_call.1} parent=11 // pred_check_branch
          %176 = sbr.rel (%p174) target = $region20
        $region19: #{tpu_custom_call.1} parent=11 // pred_region
          _
        $region20: #{tpu_custom_call.1} parent=11 // pred_fallthru
          _
        // Predicated region
        $region21: #{tpu_custom_call.1} parent=11 // pred_check
          %p177 = pneg %p123
        $region22: #{tpu_custom_call.1} parent=11 // pred_check_branch
          %179 = sbr.rel (%p177) target = $region24
        $region23: #{tpu_custom_call.1} parent=11 // pred_region
          _
        $region24: #{tpu_custom_call.1} parent=11 // pred_fallthru
          _
      $region12: #{tpu_custom_call.1} parent=5 // pred_fallthru
        _
      %p180 = scmp.lt.s32.totalorder %s13, 2
      // Predicated region
      $region25: #{tpu_custom_call.1} parent=5 // pred_check
        %p181 = pneg %p180
      $region26: #{tpu_custom_call.1} parent=5 // pred_check_branch
        %183 = sbr.rel (%p181) target = $region28
      $region27: #{tpu_custom_call.1} parent=5 // pred_region
        // Predicated region
        $region29: #{tpu_custom_call.1} parent=27 // pred_check
          %p184 = pneg %p75
        $region30: #{tpu_custom_call.1} parent=27 // pred_check_branch
          %186 = sbr.rel (%p184) target = $region32
        $region31: #{tpu_custom_call.1} parent=27 // pred_region
          %p187 = scmp.eq.s32.totalorder %s20, 0
          %s188 = scalar_select %p187, %s21, 0
          %p189 = scmp.lt.s32.totalorder %s188, 0
          %s190 = scalar_select %p189, %s188, 0
          %s191 = smul.addr %s190, 4
          %s192 = scalar_lea.vmem %s1, %s191
          %p193 = scmp.eq.s32.totalorder %s20, 0
          %s194 = scalar_select %p193, %s21, 0
        $region32: #{tpu_custom_call.1} parent=27 // pred_fallthru
          _
      $region28: #{tpu_custom_call.1} parent=5 // pred_fallthru
        _
      %p195 = scmp.le.s32.totalorder 1, %s13
      %p196 = scmp.lt.s32.totalorder %s13, 3
      %p197 = pnand %p195, %p196
      %p198 = pneg %p197
      // Predicated region
      $region33: #{tpu_custom_call.1} parent=5 // pred_check
        _
      $region34: #{tpu_custom_call.1} parent=5 // pred_check_branch
        %200 = sbr.rel (%p197) target = $region36
      $region35: #{tpu_custom_call.1} parent=5 // pred_region
        %s201 = ssub.s32 %s13, 1
        %p202 = scmp.lt.s32.totalorder %s23, 0
        %s203 = scalar_select %p202, %s23, 0
        %s204 = scalar_lea.vmem %s0, %s203
        %p205 = pneg %p51
        %p206 = pneg %p48
        %p207 = scmp.eq.s32.totalorder %s22, 0
        %s208 = scalar_select %p207, %s23, 0
        %p209 = scmp.lt.s32.totalorder %s208, 0
        %s210 = scalar_select %p209, %s208, 0
        %s211 = smul.addr %s210, 4
        %s212 = scalar_lea.vmem %s1, %s211
        %p213 = pneg %p81
        %p214 = pneg %p78
        %p215 = pneg %p102
        %p216 = pneg %p99
        %p217 = pneg %p123
        %p218 = pneg %p120
        %p219 = pneg %p153
        %p220 = pneg %p150
        %s221 = sand.u32 %s140, 1
        %s222 = scalar_lea.sflag [#allocation6], %s221
        %s223 = sand.u32 %s140, 1
        %s224 = scalar_lea.vmem [#allocation5], %s223
        %p225 = scmp.lt.s32.totalorder %s23, 0
        %s226 = scalar_select %p225, %s23, 0
        %s227 = scalar_lea.vmem %s0, %s226
        %p228 = scmp.eq.s32.totalorder %s22, 0
        %s229 = scalar_select %p228, %s23, 0
        %p230 = scmp.lt.s32.totalorder %s229, 0
        %s231 = scalar_select %p230, %s229, 0
        %s232 = smul.addr %s231, 4
        %s233 = scalar_lea.vmem %s1, %s232
        %p234 = scmp.eq.s32.totalorder %s22, 0
        %s235 = scalar_select %p234, %s23, 0
        %p236 = scmp.eq.s32.totalorder %s22, 1
        %s237 = scalar_select %p236, %s23, 0
        %v239 = vlaneseq
        %v240 = vshrl.u32 %v239, 7
        %v241 = vld [vmem:[%s227] sm:$0x1]
        %v242 = vlaneseq
        %v243 = vshrl.u32 %v242, 7
        %v244 = vsub.s32 0, %v243
        %v245 = vrot.slane %v241, %v244
        %vm246 = vcmp.eq.s32.totalorder %v240, %v245
        %p247 = scmp.eq.s32.totalorder %s22, 0
        %p248 = scmp.eq.s32.totalorder %s23, 0
        %p249 = pnand %p247, %p248
        %p250 = pneg %p249
        // Predicated region
        $region37: #{tpu_custom_call.1} parent=35 // pred_check
          _
        $region38: #{tpu_custom_call.1} parent=35 // pred_check_branch
          %252 = sbr.rel (%p249) target = $region40
        $region39: #{tpu_custom_call.1} parent=35 // pred_region
          %vm253 = vcmask 7168
          %254 = vst.msk [vmem:[#allocation2] sm:$0xff] %vm253, -1e+30
          %255 = vst.msk [vmem:[#allocation3] sm:$0xff] %vm253, 0.0
        $region40: #{tpu_custom_call.1} parent=35 // pred_fallthru
          _
        // Predicated region
        $region41: #{tpu_custom_call.1} parent=35 // pred_check
          %p256 = pneg %p247
        $region42: #{tpu_custom_call.1} parent=35 // pred_check_branch
          %258 = sbr.rel (%p256) target = $region44
        $region43: #{tpu_custom_call.1} parent=35 // pred_region
          %v259 = vld [vmem:[%s2] sm:$0xf]
          %v260 = vld [vmem:[%s2 + $0x4] sm:$0xf]
          %v261 = vld [vmem:[%s2 + $0x8] sm:$0xf]
          %v262 = vld [vmem:[%s2 + $0xc] sm:$0xf]
          %v263 = vld [vmem:[%s2 + $0x10] sm:$0xf]
          %v264 = vld [vmem:[%s2 + $0x14] sm:$0xf]
          %v265 = vld [vmem:[%s2 + $0x18] sm:$0xf]
          %v266 = vld [vmem:[%s2 + $0x1c] sm:$0xf]
          %v267 = vld [vmem:[%s2 + $0x20] sm:$0xf]
          %v268 = vld [vmem:[%s2 + $0x24] sm:$0xf]
          %v269 = vld [vmem:[%s2 + $0x28] sm:$0xf]
          %v270 = vld [vmem:[%s2 + $0x2c] sm:$0xf]
          %v271 = vld [vmem:[%s2 + $0x30] sm:$0xf]
          %v272 = vld [vmem:[%s2 + $0x34] sm:$0xf]
          %v273 = vld [vmem:[%s2 + $0x38] sm:$0xf]
          %v274 = vld [vmem:[%s2 + $0x3c] sm:$0xf]
          %v275 = vld [vmem:[%s2 + $0x40] sm:$0xf]
          %v276 = vld [vmem:[%s2 + $0x44] sm:$0xf]
          %v277 = vld [vmem:[%s2 + $0x48] sm:$0xf]
          %v278 = vld [vmem:[%s2 + $0x4c] sm:$0xf]
          %v279 = vld [vmem:[%s233] sm:$0xf]
          %v280 = vld [vmem:[%s233 + $0x4] sm:$0xf]
          %v281 = vld [vmem:[%s233 + $0x8] sm:$0xf]
          %v282 = vld [vmem:[%s233 + $0xc] sm:$0xf]
          %v283 = vld [vmem:[%s233 + $0x10] sm:$0xf]
          %v284 = vld [vmem:[%s233 + $0x14] sm:$0xf]
          %v285 = vld [vmem:[%s233 + $0x18] sm:$0xf]
          %v286 = vld [vmem:[%s233 + $0x1c] sm:$0xf]
          %v287 = vld [vmem:[%s233 + $0x20] sm:$0xf]
          %v288 = vld [vmem:[%s233 + $0x24] sm:$0xf]
          %v289 = vld [vmem:[%s233 + $0x28] sm:$0xf]
          %v290 = vld [vmem:[%s233 + $0x2c] sm:$0xf]
          %v311 = vunpack.c.l.b16 %v259
          %v312 = vunpack.c.l.b16 %v260
          %v313 = vunpack.c.l.b16 %v261
          %v314 = vunpack.c.l.b16 %v262
          %v315 = vunpack.c.l.b16 %v263
          %v316 = vunpack.c.l.b16 %v264
          %v317 = vunpack.c.l.b16 %v265
          %v318 = vunpack.c.l.b16 %v266
          %v319 = vunpack.c.l.b16 %v267
          %v320 = vunpack.c.l.b16 %v268
          %v321 = vunpack.c.l.b16 %v269
          %v322 = vunpack.c.l.b16 %v270
          %v323 = vunpack.c.l.b16 %v271
          %v324 = vunpack.c.l.b16 %v272
          %v325 = vunpack.c.l.b16 %v273
          %v326 = vunpack.c.l.b16 %v274
          %v327 = vunpack.c.l.b16 %v275
          %v328 = vunpack.c.l.b16 %v276
          %v329 = vunpack.c.l.b16 %v277
          %v330 = vunpack.c.l.b16 %v278
          %v331 = vpack.c.b16 %v312, %v311
          %v332 = vpack.c.b16 %v314, %v313
          %v333 = vpack.c.b16 %v316, %v315
          %v334 = vpack.c.b16 %v318, %v317
          %v335 = vpack.c.b16 %v320, %v319
          %v336 = vpack.c.b16 %v322, %v321
          %v337 = vpack.c.b16 %v324, %v323
          %v338 = vpack.c.b16 %v326, %v325
          %v339 = vpack.c.b16 %v328, %v327
          %v340 = vpack.c.b16 %v330, %v329
          %v353 = vunpack.c.l.b16 %v279
          %v354 = vunpack.c.l.b16 %v280
          %v355 = vunpack.c.l.b16 %v281
          %v356 = vunpack.c.l.b16 %v282
          %v357 = vunpack.c.l.b16 %v283
          %v358 = vunpack.c.l.b16 %v284
          %v359 = vunpack.c.l.b16 %v285
          %v360 = vunpack.c.l.b16 %v286
          %v361 = vunpack.c.l.b16 %v287
          %v362 = vunpack.c.l.b16 %v288
          %v363 = vunpack.c.l.b16 %v289
          %v364 = vunpack.c.l.b16 %v290
          %v365 = vpack.c.b16 %v354, %v353
          %v366 = vpack.c.b16 %v356, %v355
          %v367 = vpack.c.b16 %v358, %v357
          %v368 = vpack.c.b16 %v360, %v359
          %v369 = vpack.c.b16 %v362, %v361
          %v370 = vpack.c.b16 %v364, %v363
          %vm377 = vcmask 785408
          %v379 = vsel %vm377, %v331, 0
          %v382 = vsel %vm377, %v332, 0
          %v385 = vsel %vm377, %v333, 0
          %v388 = vsel %vm377, %v334, 0
          %v391 = vsel %vm377, %v335, 0
          %v394 = vsel %vm377, %v336, 0
          %v397 = vsel %vm377, %v337, 0
          %v400 = vsel %vm377, %v338, 0
          %v403 = vsel %vm377, %v339, 0
          %v406 = vsel %vm377, %v340, 0
          %408 = vmatprep.subr.bf16.mxu0 0
          %409 = vmatpush1.bf16.msra.mxu0 0
          %410 = vmatprep.subr.bf16.mxu0 0
          %411 = vmatpush1.bf16.msra.mxu0 0
          %412 = vmatprep.subr.bf16.mxu0 0
          %413 = vmatpush1.bf16.msra.mxu0 %v370
          %414 = vmatprep.subr.bf16.mxu0 0
          %415 = vmatpush1.bf16.msra.mxu0 %v369
          %416 = vmatprep.subr.bf16.mxu0 0
          %417 = vmatpush1.bf16.msra.mxu0 %v368
          %418 = vmatprep.subr.bf16.mxu0 0
          %419 = vmatpush1.bf16.msra.mxu0 %v367
          %420 = vmatprep.subr.bf16.mxu0 0
          %421 = vmatpush1.bf16.msra.mxu0 %v366
          %422 = vmatprep.subr.bf16.mxu0 0
          %423 = vmatpush1.bf16.msra.mxu0 %v365
          %424 = vmatprep.subr.bf16.mxu0 0
          %425 = vmatpush2.bf16.msra.mxu0 0
          %426 = vmatprep.subr.bf16.mxu0 0
          %427 = vmatpush2.bf16.msra.mxu0 0
          %428 = vmatprep.subr.bf16.mxu0 0
          %429 = vmatpush2.bf16.msra.mxu0 0
          %430 = vmatprep.subr.bf16.mxu0 0
          %431 = vmatpush2.bf16.msra.mxu0 0
          %432 = vmatprep.subr.bf16.mxu0 0
          %433 = vmatpush2.bf16.msra.mxu0 0
          %434 = vmatprep.subr.bf16.mxu0 0
          %435 = vmatpush2.bf16.msra.mxu0 0
          %436 = vmatprep.subr.bf16.mxu0 0
          %437 = vmatpush2.bf16.msra.mxu0 0
          %438 = vmatprep.subr.bf16.mxu0 0
          %439 = vmatpush2.bf16.msra.mxu0 0
          %440 = vmatprep.mubr.bf16.mxu0 0
          %441 = vmatmul.mubr.bf16.gmra.mxu0 %v379
          %v442 = vpop.f32.mrf.mxu0
          %v443 = vadd.f32 0.0, %v442
          %v444 = vpop.f32.mrf.mxu0
          %v445 = vpop.f32.mrf.mxu0
          %v446 = vadd.f32 0.0, %v445
          %v447 = vpop.f32.mrf.mxu0
          %448 = vmatprep.mubr.bf16.mxu0 0
          %449 = vmatmul.mubr.bf16.gmra.mxu0 %v382
          %v450 = vpop.f32.mrf.mxu0
          %v451 = vadd.f32 0.0, %v450
          %v452 = vpop.f32.mrf.mxu0
          %v453 = vpop.f32.mrf.mxu0
          %v454 = vadd.f32 0.0, %v453
          %v455 = vpop.f32.mrf.mxu0
          %456 = vmatprep.mubr.bf16.mxu0 0
          %457 = vmatmul.mubr.bf16.gmra.mxu0 %v385
          %v458 = vpop.f32.mrf.mxu0
          %v459 = vadd.f32 0.0, %v458
          %v460 = vpop.f32.mrf.mxu0
          %v461 = vpop.f32.mrf.mxu0
          %v462 = vadd.f32 0.0, %v461
          %v463 = vpop.f32.mrf.mxu0
          %464 = vmatprep.mubr.bf16.mxu0 0
          %465 = vmatmul.mubr.bf16.gmra.mxu0 %v388
          %v466 = vpop.f32.mrf.mxu0
          %v467 = vadd.f32 0.0, %v466
          %v468 = vpop.f32.mrf.mxu0
          %v469 = vpop.f32.mrf.mxu0
          %v470 = vadd.f32 0.0, %v469
          %v471 = vpop.f32.mrf.mxu0
          %472 = vmatprep.mubr.bf16.mxu0 0
          %473 = vmatmul.mubr.bf16.gmra.mxu0 %v391
          %v474 = vpop.f32.mrf.mxu0
          %v475 = vadd.f32 0.0, %v474
          %v476 = vpop.f32.mrf.mxu0
          %v477 = vpop.f32.mrf.mxu0
          %v478 = vadd.f32 0.0, %v477
          %v479 = vpop.f32.mrf.mxu0
          %480 = vmatprep.mubr.bf16.mxu0 0
          %481 = vmatmul.mubr.bf16.gmra.mxu0 %v394
          %v482 = vpop.f32.mrf.mxu0
          %v483 = vadd.f32 0.0, %v482
          %v484 = vpop.f32.mrf.mxu0
          %v485 = vpop.f32.mrf.mxu0
          %v486 = vadd.f32 0.0, %v485
          %v487 = vpop.f32.mrf.mxu0
          %488 = vmatprep.mubr.bf16.mxu0 0
          %489 = vmatmul.mubr.bf16.gmra.mxu0 %v397
          %v490 = vpop.f32.mrf.mxu0
          %v491 = vadd.f32 0.0, %v490
          %v492 = vpop.f32.mrf.mxu0
          %v493 = vpop.f32.mrf.mxu0
          %v494 = vadd.f32 0.0, %v493
          %v495 = vpop.f32.mrf.mxu0
          %496 = vmatprep.mubr.bf16.mxu0 0
          %497 = vmatmul.mubr.bf16.gmra.mxu0 %v400
          %v498 = vpop.f32.mrf.mxu0
          %v499 = vadd.f32 0.0, %v498
          %v500 = vpop.f32.mrf.mxu0
          %v501 = vpop.f32.mrf.mxu0
          %v502 = vadd.f32 0.0, %v501
          %v503 = vpop.f32.mrf.mxu0
          %504 = vmatprep.mubr.bf16.mxu0 0
          %505 = vmatmul.mubr.bf16.gmra.mxu0 %v403
          %v506 = vpop.f32.mrf.mxu0
          %v507 = vadd.f32 0.0, %v506
          %v508 = vpop.f32.mrf.mxu0
          %v509 = vpop.f32.mrf.mxu0
          %v510 = vadd.f32 0.0, %v509
          %v511 = vpop.f32.mrf.mxu0
          %512 = vmatprep.mubr.bf16.mxu0 0
          %513 = vmatmul.mubr.bf16.gmra.mxu0 %v406
          %v514 = vpop.f32.mrf.mxu0
          %v515 = vadd.f32 0.0, %v514
          %v516 = vpop.f32.mrf.mxu0
          %v517 = vpop.f32.mrf.mxu0
          %v518 = vadd.f32 0.0, %v517
          %v519 = vpop.f32.mrf.mxu0
          %520 = vdwg.mxu0
          %v521 = vtanh.pop %v443
          %v522 = vtanh.pop %v446
          %v523 = vtanh.pop %v451
          %v524 = vtanh.pop %v454
          %v525 = vtanh.pop %v459
          %v526 = vtanh.pop %v462
          %v527 = vtanh.pop %v467
          %v528 = vtanh.pop %v470
          %v529 = vtanh.pop %v475
          %v530 = vtanh.pop %v478
          %v531 = vtanh.pop %v483
          %v532 = vtanh.pop %v486
          %v533 = vtanh.pop %v491
          %v534 = vtanh.pop %v494
          %v535 = vtanh.pop %v499
          %v536 = vtanh.pop %v502
          %v537 = vtanh.pop %v507
          %v538 = vtanh.pop %v510
          %v539 = vtanh.pop %v515
          %v540 = vtanh.pop %v518
          %v541 = vld [vmem:[%s3] sm:$0xff]
          %v542 = vld [vmem:[%s3 + $0x8] sm:$0xff]
          %v543 = vld [vmem:[%s3 + $0x10] sm:$0xff]
          %v544 = vld [vmem:[%s3 + $0x18] sm:$0xff]
          %v545 = vld [vmem:[%s3 + $0x20] sm:$0xff]
          %v546 = vld [vmem:[%s3 + $0x28] sm:$0xff]
          %v547 = vld [vmem:[%s3 + $0x30] sm:$0xff]
          %v548 = vld [vmem:[%s3 + $0x38] sm:$0xff]
          %v549 = vld [vmem:[%s3 + $0x40] sm:$0xff]
          %v550 = vld [vmem:[%s3 + $0x48] sm:$0xff]
          %v551 = vld [vmem:[%s3 + $0x50] sm:$0xff]
          %v552 = vld [vmem:[%s3 + $0x58] sm:$0xff]
          %v553 = vld [vmem:[%s3 + $0x60] sm:$0xff]
          %v554 = vld [vmem:[%s3 + $0x68] sm:$0xff]
          %v555 = vld [vmem:[%s3 + $0x70] sm:$0xff]
          %v556 = vld [vmem:[%s3 + $0x78] sm:$0xff]
          %v557 = vld [vmem:[%s3 + $0x80] sm:$0xff]
          %v558 = vld [vmem:[%s3 + $0x88] sm:$0xff]
          %v559 = vld [vmem:[%s3 + $0x90] sm:$0xff]
          %v560 = vld [vmem:[%s3 + $0x98] sm:$0xff]
          %562 = vset.pattern.permute.xlu0 0
          %563 = vperm.xlu0 %562, %v541
          %v564 = vpop.permute.xlu0 %563
          %567 = vset.pattern.permute.xlu0 0
          %568 = vperm.xlu0 %567, %v542
          %v569 = vpop.permute.xlu0 %568
          %572 = vset.pattern.permute.xlu0 0
          %573 = vperm.xlu0 %572, %v543
          %v574 = vpop.permute.xlu0 %573
          %577 = vset.pattern.permute.xlu0 0
          %578 = vperm.xlu0 %577, %v544
          %v579 = vpop.permute.xlu0 %578
          %582 = vset.pattern.permute.xlu0 0
          %583 = vperm.xlu0 %582, %v545
          %v584 = vpop.permute.xlu0 %583
          %587 = vset.pattern.permute.xlu0 0
          %588 = vperm.xlu0 %587, %v546
          %v589 = vpop.permute.xlu0 %588
          %592 = vset.pattern.permute.xlu0 0
          %593 = vperm.xlu0 %592, %v547
          %v594 = vpop.permute.xlu0 %593
          %597 = vset.pattern.permute.xlu0 0
          %598 = vperm.xlu0 %597, %v548
          %v599 = vpop.permute.xlu0 %598
          %602 = vset.pattern.permute.xlu0 0
          %603 = vperm.xlu0 %602, %v549
          %v604 = vpop.permute.xlu0 %603
          %607 = vset.pattern.permute.xlu0 0
          %608 = vperm.xlu0 %607, %v550
          %v609 = vpop.permute.xlu0 %608
          %612 = vset.pattern.permute.xlu0 0
          %613 = vperm.xlu0 %612, %v551
          %v614 = vpop.permute.xlu0 %613
          %617 = vset.pattern.permute.xlu0 0
          %618 = vperm.xlu0 %617, %v552
          %v619 = vpop.permute.xlu0 %618
          %622 = vset.pattern.permute.xlu0 0
          %623 = vperm.xlu0 %622, %v553
          %v624 = vpop.permute.xlu0 %623
          %627 = vset.pattern.permute.xlu0 0
          %628 = vperm.xlu0 %627, %v554
          %v629 = vpop.permute.xlu0 %628
          %632 = vset.pattern.permute.xlu0 0
          %633 = vperm.xlu0 %632, %v555
          %v634 = vpop.permute.xlu0 %633
          %637 = vset.pattern.permute.xlu0 0
          %638 = vperm.xlu0 %637, %v556
          %v639 = vpop.permute.xlu0 %638
          %642 = vset.pattern.permute.xlu0 0
          %643 = vperm.xlu0 %642, %v557
          %v644 = vpop.permute.xlu0 %643
          %647 = vset.pattern.permute.xlu0 0
          %648 = vperm.xlu0 %647, %v558
          %v649 = vpop.permute.xlu0 %648
          %652 = vset.pattern.permute.xlu0 0
          %653 = vperm.xlu0 %652, %v559
          %v654 = vpop.permute.xlu0 %653
          %657 = vset.pattern.permute.xlu0 0
          %658 = vperm.xlu0 %657, %v560
          %v659 = vpop.permute.xlu0 %658
          %v661 = vmul.f32 %v521, %v564
          %v662 = vmul.f32 %v522, %v569
          %v663 = vmul.f32 %v523, %v574
          %v664 = vmul.f32 %v524, %v579
          %v665 = vmul.f32 %v525, %v584
          %v666 = vmul.f32 %v526, %v589
          %v667 = vmul.f32 %v527, %v594
          %v668 = vmul.f32 %v528, %v599
          %v669 = vmul.f32 %v529, %v604
          %v670 = vmul.f32 %v530, %v609
          %v671 = vmul.f32 %v531, %v614
          %v672 = vmul.f32 %v532, %v619
          %v673 = vmul.f32 %v533, %v624
          %v674 = vmul.f32 %v534, %v629
          %v675 = vmul.f32 %v535, %v634
          %v676 = vmul.f32 %v536, %v639
          %v677 = vmul.f32 %v537, %v644
          %v678 = vmul.f32 %v538, %v649
          %v679 = vmul.f32 %v539, %v654
          %v680 = vmul.f32 %v540, %v659
          %v681 = vadd.f32 %v661, %v662
          %v682 = vadd.f32 %v681, %v663
          %v683 = vadd.f32 %v682, %v664
          %v684 = vadd.f32 %v683, %v665
          %v685 = vadd.f32 %v684, %v666
          %v686 = vadd.f32 %v685, %v667
          %v687 = vadd.f32 %v686, %v668
          %v688 = vadd.f32 %v687, %v669
          %v689 = vadd.f32 %v688, %v670
          %v690 = vadd.f32 %v689, %v671
          %v691 = vadd.f32 %v690, %v672
          %v692 = vadd.f32 %v691, %v673
          %v693 = vadd.f32 %v692, %v674
          %v694 = vadd.f32 %v693, %v675
          %v695 = vadd.f32 %v694, %v676
          %v696 = vadd.f32 %v695, %v677
          %v697 = vadd.f32 %v696, %v678
          %v698 = vadd.f32 %v697, %v679
          %v699 = vadd.f32 %v698, %v680
          %v700 = vrot.slane %v699, 4
          %v701 = vadd.f32 %v699, %v700
          %v702 = vrot.slane %v701, 2
          %v703 = vadd.f32 %v701, %v702
          %v704 = vrot.slane %v703, 1
          %v705 = vadd.f32 %v703, %v704
          %s706 = scalar_lea.vmem [#allocation4], %s23
          %707 = vst [vmem:[%s706] sm:$0x1] %v705
          %v708 = vsel %vm246, %v705, -1e+30
          %709 = vmax.xlane.f32.xlu0 %v708
          %v710 = vpop.xlane.xlu0 %709
          %v711 = vld [vmem:[#allocation2] sm:$0xff]
          %v712 = vmax.f32 %v711, %v710
          %714 = vset.pattern.permute.xlu0 0
          %715 = vperm.xlu0 %714, %v712
          %v716 = vpop.permute.xlu0 %715
          %v718 = vsel %vm246, %v716, 0.0
          %v719 = vrot.slane %v718, 4
          %v720 = vadd.f32 %v718, %v719
          %v721 = vrot.slane %v720, 2
          %v722 = vadd.f32 %v720, %v721
          %v723 = vrot.slane %v722, 1
          %v724 = vadd.f32 %v722, %v723
          %v725 = vsub.f32 %v705, %v724
          %v726 = vmul.f32 %v725, 1.442695
          %v727 = vpow.pop %v726
          %v728 = vsel %vm246, %v727, 0.0
          %729 = vadd.xlane.f32.xlu0 %v728
          %v730 = vpop.xlane.xlu0 %729
          %v731 = vld [vmem:[#allocation3] sm:$0xff]
          %v732 = vsub.f32 %v711, %v712
          %v733 = vmul.f32 %v732, 1.442695
          %v734 = vpow.pop %v733
          %v735 = vmul.f32 %v731, %v734
          %v736 = vadd.f32 %v735, %v730
          %vm737 = vcmask 7168
          %738 = vst.msk [vmem:[#allocation3] sm:$0xff] %vm737, %v736
          %739 = vst.msk [vmem:[#allocation2] sm:$0xff] %vm737, %v712
        $region44: #{tpu_custom_call.1} parent=35 // pred_fallthru
          _
        %p740 = scmp.eq.s32.totalorder %s22, 1
        // Predicated region
        $region45: #{tpu_custom_call.1} parent=35 // pred_check
          %p741 = pneg %p740
        $region46: #{tpu_custom_call.1} parent=35 // pred_check_branch
          %743 = sbr.rel (%p741) target = $region48
        $region47: #{tpu_custom_call.1} parent=35 // pred_region
          %s744 = scalar_lea.vmem [#allocation4], %s23
          %v745 = vld [vmem:[%s744] sm:$0x1]
          %v746 = vld [vmem:[#allocation2] sm:$0xff]
          %748 = vset.pattern.permute.xlu0 0
          %749 = vperm.xlu0 %748, %v746
          %v750 = vpop.permute.xlu0 %749
          %v752 = vsel %vm246, %v750, 0.0
          %v753 = vrot.slane %v752, 4
          %v754 = vadd.f32 %v752, %v753
          %v755 = vrot.slane %v754, 2
          %v756 = vadd.f32 %v754, %v755
          %v757 = vrot.slane %v756, 1
          %v758 = vadd.f32 %v756, %v757
          %v759 = vld [vmem:[#allocation3] sm:$0xff]
          %761 = vset.pattern.permute.xlu0 0
          %762 = vperm.xlu0 %761, %v759
          %v763 = vpop.permute.xlu0 %762
          %v765 = vsel %vm246, %v763, 0.0
          %v766 = vrot.slane %v765, 4
          %v767 = vadd.f32 %v765, %v766
          %v768 = vrot.slane %v767, 2
          %v769 = vadd.f32 %v767, %v768
          %v770 = vrot.slane %v769, 1
          %v771 = vadd.f32 %v769, %v770
          %vm772 = vcmp.gt.f32.partialorder %v771, 0.0
          %v773 = vsel %vm772, %v771, 1.0
          %v774 = vsub.f32 %v745, %v758
          %v775 = vmul.f32 %v774, 1.442695
          %v776 = vpow.pop %v775
          %v777 = vrcp.pop %v773
          %v778 = vmul.f32 %v776, %v777
          %779 = vst [vmem:[%s224] sm:$0x1] %v778
        $region48: #{tpu_custom_call.1} parent=35 // pred_fallthru
          _
        %s780 = sand.u32 %s140, 1
        %s781 = scalar_lea.sflag [#allocation6], %s780
        %s782 = sand.u32 %s140, 1
        %s783 = scalar_lea.vmem [#allocation5], %s782
        // Predicated region
        $region49: #{tpu_custom_call.1} parent=35 // pred_check
          %p784 = pneg %p150
        $region50: #{tpu_custom_call.1} parent=35 // pred_check_branch
          %786 = sbr.rel (%p784) target = $region52
        $region51: #{tpu_custom_call.1} parent=35 // pred_region
          %p787 = scmp.eq.s32.totalorder %s22, 1
          %s788 = scalar_select %p787, %s23, 0
          %s790 = ssub.s32 16, 16
          %791 = vsyncadd %s781, %s790
          %s792 = smul.addr %s788, 16
          %s793 = scalar_lea.hbm %s4, %s792
          %s795 = sshll.u32 %s783, 4
          %s796 = int_to_ptr.vmem [resolvable:$true] %s795
          %798 = dma.vmem_to_hbm [thread:$0]  %s796, 16, %s793, %s781
        $region52: #{tpu_custom_call.1} parent=35 // pred_fallthru
          _
      $region36: #{tpu_custom_call.1} parent=5 // pred_fallthru
        _
      %p799 = scmp.le.s32.totalorder 2, %s13
      // Predicated region
      $region53: #{tpu_custom_call.1} parent=5 // pred_check
        %p800 = pneg %p799
      $region54: #{tpu_custom_call.1} parent=5 // pred_check_branch
        %802 = sbr.rel (%p800) target = $region56
      $region55: #{tpu_custom_call.1} parent=5 // pred_region
        %s803 = ssub.s32 %s13, 2
        // Predicated region
        $region57: #{tpu_custom_call.1} parent=55 // pred_check
          %p804 = pneg %p156
        $region58: #{tpu_custom_call.1} parent=55 // pred_check_branch
          %806 = sbr.rel (%p804) target = $region60
        $region59: #{tpu_custom_call.1} parent=55 // pred_region
          %s807 = sand.u32 %s141, 1
          %s808 = scalar_lea.sflag [#allocation6], %s807
          %s809 = sand.u32 %s141, 1
          %s810 = scalar_lea.vmem [#allocation5], %s809
          %811 = dma.done %s808, 16
        $region60: #{tpu_custom_call.1} parent=55 // pred_fallthru
          _
      $region56: #{tpu_custom_call.1} parent=5 // pred_fallthru
        _
    $region6: #{tpu_custom_call.1} parent=1 // loop_footer
      %s17 = sadd.s32 1, %s13
    $region7: #{tpu_custom_call.1} parent=1 // loop_footer_branch
      %12 = sbr.rel target = $region3
    $region8: #{tpu_custom_call.1} parent=1 // loop_exit
      _
    %812 = vsyncpa [#allocation6], 1
    %s813 = scalar_lea.sflag [#allocation6], 1
    %814 = vsyncpa %s813, 1

</llo_original>
